<compile_context>
chip_gen: v6e
topology: v6e:2x2x1
jax: 0.10.0
libtpu: 0.0.40
codegen_flags: <defaults>
</compile_context>

<pallas_src>
import math
import functools

import jax
import jax.numpy as jnp
from jax import lax
from jax.experimental import pallas as pl
from jax.experimental.pallas import tpu as pltpu

_BN_EPS = 1e-5
_VMEM_BUDGET = 24 * 1024 * 1024   # target for double-buffered row tiles
_VMEM_LIMIT = 48 * 1024 * 1024    # <= v7x physical (64 MiB), plenty on v5e/v6e


def _round_up(a, b):
    return (a + b - 1) // b * b


def _pick_tm(M, row_widths, fixed_bytes):
    """Largest row-tile (mult of 16, <=512) whose buffers fit the VMEM budget."""
    tm = max(16, min(512, _round_up(M, 16)))

    def cost(t):
        # double-buffered (tm, C) tiles for every row-shaped operand/output
        return fixed_bytes + 4 * 2 * t * sum(row_widths)

    while tm > 16 and cost(tm) > _VMEM_BUDGET:
        tm = max(16, _round_up(tm // 2, 16))
    return tm


# ----------------------------------------------------------------------------
# Kernel 1: matmul + shift [+ residual] [+ ReLU]   (BN scale pre-folded into w)
# ----------------------------------------------------------------------------
def _mm_kernel(has_res, relu, *refs):
    if has_res:
        x_ref, w_ref, shift_ref, res_ref, o_ref = refs
    else:
        x_ref, w_ref, shift_ref, o_ref = refs
    y = jnp.dot(x_ref[...], w_ref[...], preferred_element_type=jnp.float32)
    y = y + shift_ref[...]
    if has_res:
        y = y + res_ref[...]
    if relu:
        y = jnp.maximum(y, 0.0)
    o_ref[...] = y.astype(o_ref.dtype)


def _fused_matmul(x2d, w2d, shift, *, relu, residual=None,
                  compute_dtype=jnp.float32):
    """(M, Cin) @ (Cin, Cout) + shift [+ residual] [+ relu], tiled over M."""
    M, Cin = x2d.shape
    Cout = w2d.shape[1]
    row_w = [Cin, Cout] + ([Cout] if residual is not None else [])
    tm = _pick_tm(M, row_w, 8 * (Cin * Cout + Cout))
    Mp = _round_up(M, tm)

    x2d = x2d.astype(compute_dtype)
    w2d = w2d.astype(compute_dtype)
    if residual is not None:
        residual = residual.astype(jnp.float32)
    if Mp != M:
        x2d = jnp.pad(x2d, ((0, Mp - M), (0, 0)))
        if residual is not None:
            residual = jnp.pad(residual, ((0, Mp - M), (0, 0)))

    args = [x2d, w2d, shift.reshape(1, Cout).astype(jnp.float32)]
    in_specs = [
        pl.BlockSpec((tm, Cin), lambda i: (i, 0)),
        pl.BlockSpec((Cin, Cout), lambda i: (0, 0)),
        pl.BlockSpec((1, Cout), lambda i: (0, 0)),
    ]
    if residual is not None:
        args.append(residual)
        in_specs.append(pl.BlockSpec((tm, Cout), lambda i: (i, 0)))

    out = pl.pallas_call(
        functools.partial(_mm_kernel, residual is not None, relu),
        grid=(Mp // tm,),
        in_specs=in_specs,
        out_specs=pl.BlockSpec((tm, Cout), lambda i: (i, 0)),
        out_shape=jax.ShapeDtypeStruct((Mp, Cout), jnp.float32),
        compiler_params=pltpu.CompilerParams(
            dimension_semantics=("parallel",),
            vmem_limit_bytes=_VMEM_LIMIT),
    )(*args)
    return out[:M] if Mp != M else out


# ----------------------------------------------------------------------------
# Kernel 2: dual matmul + shift + ReLU  (body 1x1 fused with projection
# shortcut 1x1; BN scales pre-folded, shifts pre-summed)
# ----------------------------------------------------------------------------
def _dual_mm_relu_kernel(a_ref, wa_ref, b_ref, wb_ref, shift_ref, o_ref):
    y = jnp.dot(a_ref[...], wa_ref[...], preferred_element_type=jnp.float32)
    y = y + jnp.dot(b_ref[...], wb_ref[...], preferred_element_type=jnp.float32)
    y = y + shift_ref[...]
    o_ref[...] = jnp.maximum(y, 0.0).astype(o_ref.dtype)


def _fused_dual_matmul(a2d, wa, b2d, wb, shift, *, compute_dtype=jnp.float32):
    M, Ca = a2d.shape
    Cb = b2d.shape[1]
    Cout = wa.shape[1]
    tm = _pick_tm(M, [Ca, Cb, Cout], 8 * ((Ca + Cb) * Cout + Cout))
    Mp = _round_up(M, tm)

    a2d = a2d.astype(compute_dtype)
    b2d = b2d.astype(compute_dtype)
    wa = wa.astype(compute_dtype)
    wb = wb.astype(compute_dtype)
    if Mp != M:
        a2d = jnp.pad(a2d, ((0, Mp - M), (0, 0)))
        b2d = jnp.pad(b2d, ((0, Mp - M), (0, 0)))

    out = pl.pallas_call(
        _dual_mm_relu_kernel,
        grid=(Mp // tm,),
        in_specs=[
            pl.BlockSpec((tm, Ca), lambda i: (i, 0)),
            pl.BlockSpec((Ca, Cout), lambda i: (0, 0)),
            pl.BlockSpec((tm, Cb), lambda i: (i, 0)),
            pl.BlockSpec((Cb, Cout), lambda i: (0, 0)),
            pl.BlockSpec((1, Cout), lambda i: (0, 0)),
        ],
        out_specs=pl.BlockSpec((tm, Cout), lambda i: (i, 0)),
        out_shape=jax.ShapeDtypeStruct((Mp, Cout), jnp.float32),
        compiler_params=pltpu.CompilerParams(
            dimension_semantics=("parallel",),
            vmem_limit_bytes=_VMEM_LIMIT),
    )(a2d, wa, b2d, wb, shift.reshape(1, Cout).astype(jnp.float32))
    return out[:M] if Mp != M else out


# ----------------------------------------------------------------------------
# 3x3 conv (pad=1, stride s) + BN + ReLU as ONE deep-K matmul:
# strided im2col slab (M_out, 9*Cin) @ (9*Cin, Cout).
# ----------------------------------------------------------------------------
def conv3x3_bn_relu(x, w_hwio, scale, shift, *, stride,
                    compute_dtype=jnp.float32):
    N, H, W, Cin = x.shape
    Cout = w_hwio.shape[-1]
    Ho = (H - 1) // stride + 1
    Wo = (W - 1) // stride + 1
    xp = jnp.pad(x, ((0, 0), (1, 1), (1, 1), (0, 0)))
    # strided window views -> only M_out = N*Ho*Wo output rows get computed
    taps = [
        xp[:, dy:dy + stride * (Ho - 1) + 1:stride,
              dx:dx + stride * (Wo - 1) + 1:stride, :]
        for dy in range(3) for dx in range(3)
    ]
    slab = jnp.concatenate(taps, axis=-1).reshape(N * Ho * Wo, 9 * Cin)
    # fold BN scale into the weight columns, flatten HWIO -> (9*Cin, Cout)
    wm = (w_hwio * scale[None, None, None, :]).reshape(9 * Cin, Cout)
    out = _fused_matmul(slab, wm, shift, relu=True, compute_dtype=compute_dtype)
    return out.reshape(N, Ho, Wo, Cout)


# ----------------------------------------------------------------------------
# Parameters (deterministic, eval-mode BatchNorm: gamma/beta/mean/var)
# ----------------------------------------------------------------------------
def _conv_w(key, kh, kw, cin, cout):
    fan = kh * kw * cin
    return jax.random.normal(key, (kh, kw, cin, cout), jnp.float32) / math.sqrt(fan)


def _bn_params(key, c):
    k1, k2, k3, k4 = jax.random.split(key, 4)
    gamma = 1.0 + 0.1 * jax.random.normal(k1, (c,), jnp.float32)
    beta = 0.1 * jax.random.normal(k2, (c,), jnp.float32)
    mean = 0.1 * jax.random.normal(k3, (c,), jnp.float32)
    var = jnp.abs(jax.random.normal(k4, (c,), jnp.float32)) + 0.5
    return gamma, beta, mean, var


def _fold_bn(p):
    gamma, beta, mean, var = p
    scale = gamma / jnp.sqrt(var + _BN_EPS)
    shift = beta - mean * scale
    return scale, shift


def init_block_params(key, inp, outp, stride):
    # Slimmable layers at a single selected width; midp = outp // 4.
    midp = outp // 4
    ks = jax.random.split(key, 8)
    params = {
        "w1": _conv_w(ks[0], 1, 1, inp, midp),
        "bn1": _bn_params(ks[1], midp),
        "w2": _conv_w(ks[2], 3, 3, midp, midp),
        "bn2": _bn_params(ks[3], midp),
        "w3": _conv_w(ks[4], 1, 1, midp, outp),
        "bn3": _bn_params(ks[5], outp),
    }
    if not (stride == 1 and inp == outp):
        params["ws"] = _conv_w(ks[6], 1, 1, inp, outp)
        params["bns"] = _bn_params(ks[7], outp)
    return params


# ----------------------------------------------------------------------------
# Block forward (matches s_resnet.Block.forward, BN in inference mode)
# ----------------------------------------------------------------------------
def block_forward(x_nchw, params, *, inp, outp, stride,
                  compute_dtype=jnp.float32):
    midp = outp // 4
    residual_connection = (stride == 1) and (inp == outp)
    x = jnp.transpose(x_nchw, (0, 2, 3, 1)).astype(jnp.float32)  # NCHW -> NHWC
    N, H, W, _ = x.shape
    Ho = (H - 1) // stride + 1
    Wo = (W - 1) // stride + 1

    s1, b1 = _fold_bn(params["bn1"])
    s2, b2 = _fold_bn(params["bn2"])
    s3, b3 = _fold_bn(params["bn3"])

    # conv1 (1x1) + BN + ReLU  — BN scale folded into weight columns
    w1 = params["w1"].reshape(inp, midp) * s1[None, :]
    h = _fused_matmul(x.reshape(N * H * W, inp), w1, b1, relu=True,
                      compute_dtype=compute_dtype)
    h = h.reshape(N, H, W, midp)

    # conv2 (3x3, stride) + BN + ReLU — strided im2col, one deep-K matmul
    h = conv3x3_bn_relu(h, params["w2"], s2, b2, stride=stride,
                        compute_dtype=compute_dtype)
    h2d = h.reshape(N * Ho * Wo, midp)

    # conv3 (1x1) + BN fused with the residual path + post ReLU
    w3 = params["w3"].reshape(midp, outp) * s3[None, :]
    if residual_connection:
        out2d = _fused_matmul(h2d, w3, b3, relu=True,
                              residual=x.reshape(N * H * W, outp),
                              compute_dtype=compute_dtype)
    else:
        ss, bs = _fold_bn(params["bns"])
        ws = params["ws"].reshape(inp, outp) * ss[None, :]
        xs = x[:, ::stride, ::stride, :].reshape(N * Ho * Wo, inp)
        out2d = _fused_dual_matmul(h2d, w3, xs, ws, b3 + bs,
                                   compute_dtype=compute_dtype)

    out = out2d.reshape(N, Ho, Wo, outp)
    return jnp.transpose(out, (0, 3, 1, 2))  # NHWC -> NCHW


# ----------------------------------------------------------------------------
# Pure-JAX reference (lax.conv) for correctness checking
# ----------------------------------------------------------------------------
def block_reference(x_nchw, params, *, inp, outp, stride):
    x = jnp.transpose(x_nchw, (0, 2, 3, 1)).astype(jnp.float32)

    def conv(z, w, s, pad):
        return lax.conv_general_dilated(
            z, w, (s, s), [(pad, pad), (pad, pad)],
            dimension_numbers=("NHWC", "HWIO", "NHWC"))

    def bn(z, p):
        g, b, m, v = p
        return (z - m) / jnp.sqrt(v + _BN_EPS) * g + b

    h = jax.nn.relu(bn(conv(x, params["w1"], 1, 0), params["bn1"]))
    h = jax.nn.relu(bn(conv(h, params["w2"], stride, 1), params["bn2"]))
    h = bn(conv(h, params["w3"], 1, 0), params["bn3"])
    if stride == 1 and inp == outp:
        res = h + x
    else:
        res = h + bn(conv(x, params["ws"], stride, 0), params["bns"])
    return jnp.transpose(jax.nn.relu(res), (0, 3, 1, 2))


if __name__ == "__main__":
    key = jax.random.PRNGKey(0)
    kx, kp1, kp2 = jax.random.split(key, 3)

    # Case 1: downsampling block with projection shortcut.
    inp, outp, stride = 16, 32, 2
    x = jax.random.normal(kx, (2, inp, 8, 8), jnp.float32)  # NCHW
    params = init_block_params(kp1, inp, outp, stride)
    y = block_forward(x, params, inp=inp, outp=outp, stride=stride)
    y = jax.block_until_ready(y)
    y_ref = block_reference(x, params, inp=inp, outp=outp, stride=stride)
    assert y.shape == (2, outp, 4, 4), y.shape
    assert jnp.allclose(y, y_ref, rtol=1e-4, atol=1e-4)

    # Case 2: identity-residual block (stride=1, inp == outp).
    inp2, outp2, stride2 = 16, 16, 1
    params2 = init_block_params(kp2, inp2, outp2, stride2)
    y2 = block_forward(x, params2, inp=inp2, outp=outp2, stride=stride2)
    y2 = jax.block_until_ready(y2)
    y2_ref = block_reference(x, params2, inp=inp2, outp=outp2, stride=stride2)
    assert y2.shape == (2, outp2, 8, 8), y2.shape
    assert jnp.allclose(y2, y2_ref, rtol=1e-4, atol=1e-4)

    print("KERNEL_OK")
</pallas_src>

<mosaic_0001>
module attributes {stable_mosaic.version = 11 : i64} {
  func.func @_mm_kernel(%arg0: i32, %arg1: memref<128x16xf32, #tpu.memory_space<vmem>>, %arg2: memref<16x8xf32, #tpu.memory_space<vmem>>, %arg3: memref<1x8xf32, #tpu.memory_space<vmem>>, %arg4: memref<128x8xf32, #tpu.memory_space<vmem>>) attributes {dimension_semantics = [#tpu.dimension_semantics<parallel>], iteration_bounds = array<i64: 1>, scalar_prefetch = 0 : i64, scratch_operands = 0 : i64, tpu.core_type = #tpu.core_type<tc>, window_params = [{transform_indices = @transform_0, window_bounds = array<i64: 128, 16>}, {pipeline_mode = #tpu.pipeline_mode<synchronous>, transform_indices = @transform_1, window_bounds = array<i64: 16, 8>}, {pipeline_mode = #tpu.pipeline_mode<synchronous>, transform_indices = @transform_2, window_bounds = array<i64: 1, 8>}, {transform_indices = @transform_3, window_bounds = array<i64: 128, 8>}]} {
    %c0 = arith.constant 0 : index
    %c0_0 = arith.constant 0 : index
    %0 = vector.load %arg1[%c0, %c0_0] : memref<128x16xf32, #tpu.memory_space<vmem>>, vector<128x16xf32>
    %c0_1 = arith.constant 0 : index
    %c0_2 = arith.constant 0 : index
    %1 = vector.load %arg2[%c0_1, %c0_2] : memref<16x8xf32, #tpu.memory_space<vmem>>, vector<16x8xf32>
    %cst = arith.constant dense<0.000000e+00> : vector<128x8xf32>
    %2 = tpu.matmul %0, %1, %cst {dimension_numbers = #tpu.dot_dimension_numbers<[1], [0], [0], [1], [0, 0, 1, 1], [], []>} : vector<128x16xf32>, vector<16x8xf32>, vector<128x8xf32> -> vector<128x8xf32>
    %c0_3 = arith.constant 0 : index
    %c0_4 = arith.constant 0 : index
    %3 = vector.load %arg3[%c0_3, %c0_4] : memref<1x8xf32, #tpu.memory_space<vmem>>, vector<1x8xf32>
    %4 = vector.broadcast %3 : vector<1x8xf32> to vector<128x8xf32>
    %5 = arith.addf %2, %4 : vector<128x8xf32>
    %cst_5 = arith.constant 0.000000e+00 : f32
    %6 = vector.broadcast %cst_5 : f32 to vector<128x8xf32>
    %7 = arith.maximumf %5, %6 : vector<128x8xf32>
    %c0_6 = arith.constant 0 : index
    %c0_7 = arith.constant 0 : index
    %8 = vector.load %arg4[%c0_6, %c0_7] : memref<128x8xf32, #tpu.memory_space<vmem>>, vector<128x8xf32>
    tpu.vector_store %arg4[%c0_6, %c0_7], %7 {strides = array<i32>} : memref<128x8xf32, #tpu.memory_space<vmem>>, vector<128x8xf32>,
    return
  }
  func.func @transform_0(%arg0: i32) -> (i32, i32) {
    %c0_i32 = arith.constant 0 : i32
    %c0_i32_0 = arith.constant 0 : i32
    return %arg0, %c0_i32 : i32, i32
  }
  func.func @transform_1(%arg0: i32) -> (i32, i32) {
    %c0_i32 = arith.constant 0 : i32
    %c0_i32_0 = arith.constant 0 : i32
    %c0_i32_1 = arith.constant 0 : i32
    return %c0_i32, %c0_i32_0 : i32, i32
  }
  func.func @transform_2(%arg0: i32) -> (i32, i32) {
    %c0_i32 = arith.constant 0 : i32
    %c0_i32_0 = arith.constant 0 : i32
    %c0_i32_1 = arith.constant 0 : i32
    return %c0_i32, %c0_i32_0 : i32, i32
  }
  func.func @transform_3(%arg0: i32) -> (i32, i32) {
    %c0_i32 = arith.constant 0 : i32
    %c0_i32_0 = arith.constant 0 : i32
    return %arg0, %c0_i32 : i32, i32
  }
}

</mosaic_0001>

<llo_original>
// kernel: tpu_custom_call.1
$region0: #{tpu_custom_call.1}
  #allocation0 [shape = 'u32[]', space=smem, size = 0x4, offset = 0x4, fixed_abs, tag = 'smem constant byte address 0x4 - core index']
  #allocation1 [shape = 'u32[144,128]{1,0:T(1,128)}', space=vmem, size = 0x12000, scoped, tag = 'internal scratch']
  %s0 = inlined_call_operand.vmem [shape: f32[128,16], index: 0, kind: input, shape index: {}]
  %s1 = inlined_call_operand.vmem [shape: f32[16,8], index: 1, kind: input, shape index: {}]
  %s2 = inlined_call_operand.vmem [shape: f32[1,8], index: 2, kind: input, shape index: {}]
  %s3 = inlined_call_operand.vmem [shape: f32[128,8], index: 3, kind: output, shape index: {}]
  %s4 = sld [smem:[#allocation0]]
  $region22: #{tpu_custom_call.1} parent=0
    _
  %s6 = ssub.s32 1, %s4
  %s7 = scalar_select 0, %s6, %s4
  // Predicated region
  $region2: #{tpu_custom_call.1} parent=0 // pred_check
    _
  $region3: #{tpu_custom_call.1} parent=0 // pred_check_branch
    %9 = sbr.rel (0) target = $region5
  $region4: #{tpu_custom_call.1} parent=0 // pred_region
    _
  $region5: #{tpu_custom_call.1} parent=0 // pred_fallthru
    _
  // Predicated region
  $region6: #{tpu_custom_call.1} parent=0 // pred_check
    _
  $region7: #{tpu_custom_call.1} parent=0 // pred_check_branch
    %11 = sbr.rel (0) target = $region9
  $region8: #{tpu_custom_call.1} parent=0 // pred_region
    _
  $region9: #{tpu_custom_call.1} parent=0 // pred_fallthru
    _
  // Predicated region
  $region10: #{tpu_custom_call.1} parent=0 // pred_check
    _
  $region11: #{tpu_custom_call.1} parent=0 // pred_check_branch
    %13 = sbr.rel (0) target = $region13
  $region12: #{tpu_custom_call.1} parent=0 // pred_region
    _
  $region13: #{tpu_custom_call.1} parent=0 // pred_fallthru
    _
  %v14 = vld [vmem:[%s0] sm:$0xff]
  %v15 = vld [vmem:[%s0 + $0x8] sm:$0xff]
  %v16 = vld [vmem:[%s0 + $0x10] sm:$0xff]
  %v17 = vld [vmem:[%s0 + $0x18] sm:$0xff]
  %v18 = vld [vmem:[%s0 + $0x20] sm:$0xff]
  %v19 = vld [vmem:[%s0 + $0x28] sm:$0xff]
  %v20 = vld [vmem:[%s0 + $0x30] sm:$0xff]
  %v21 = vld [vmem:[%s0 + $0x38] sm:$0xff]
  %v22 = vld [vmem:[%s0 + $0x40] sm:$0xff]
  %v23 = vld [vmem:[%s0 + $0x48] sm:$0xff]
  %v24 = vld [vmem:[%s0 + $0x50] sm:$0xff]
  %v25 = vld [vmem:[%s0 + $0x58] sm:$0xff]
  %v26 = vld [vmem:[%s0 + $0x60] sm:$0xff]
  %v27 = vld [vmem:[%s0 + $0x68] sm:$0xff]
  %v28 = vld [vmem:[%s0 + $0x70] sm:$0xff]
  %v29 = vld [vmem:[%s0 + $0x78] sm:$0xff]
  %v30 = vld [vmem:[%s1] sm:$0xff]
  %v31 = vld [vmem:[%s1 + $0x8] sm:$0xff]
  %v32 = vld [vmem:[%s2] sm:$0x1]
  %v34 = vlaneseq
  %v35 = vshrl.u32 %v34, 7
  %v36 = vsub.s32 0, %v35
  %v37 = vrot.slane %v32, %v36
  %vm39 = vcmask 130048
  %v41 = vsel %vm39, %v14, 0
  %v44 = vsel %vm39, %v15, 0
  %v47 = vsel %vm39, %v16, 0
  %v50 = vsel %vm39, %v17, 0
  %v53 = vsel %vm39, %v18, 0
  %v56 = vsel %vm39, %v19, 0
  %v59 = vsel %vm39, %v20, 0
  %v62 = vsel %vm39, %v21, 0
  %v65 = vsel %vm39, %v22, 0
  %v68 = vsel %vm39, %v23, 0
  %v71 = vsel %vm39, %v24, 0
  %v74 = vsel %vm39, %v25, 0
  %v77 = vsel %vm39, %v26, 0
  %v80 = vsel %vm39, %v27, 0
  %v83 = vsel %vm39, %v28, 0
  %v86 = vsel %vm39, %v29, 0
  %88 = vmatprep.subr.mxu0 0.0
  %89 = vmatpush1.msra.mxu0 0.0
  %90 = vmatprep.subr.mxu0 0.0
  %91 = vmatpush1.msra.mxu0 0.0
  %92 = vmatprep.subr.mxu0 0.0
  %93 = vmatpush1.msra.mxu0 0.0
  %94 = vmatprep.subr.mxu0 0.0
  %95 = vmatpush1.msra.mxu0 0.0
  %96 = vmatprep.subr.mxu0 0.0
  %97 = vmatpush1.msra.mxu0 0.0
  %98 = vmatprep.subr.mxu0 0.0
  %99 = vmatpush1.msra.mxu0 0.0
  %100 = vmatprep.subr.mxu0 0.0
  %101 = vmatpush1.msra.mxu0 0.0
  %102 = vmatprep.subr.mxu0 0.0
  %103 = vmatpush1.msra.mxu0 0.0
  %104 = vmatprep.subr.mxu0 0.0
  %105 = vmatpush1.msra.mxu0 0.0
  %106 = vmatprep.subr.mxu0 0.0
  %107 = vmatpush1.msra.mxu0 0.0
  %108 = vmatprep.subr.mxu0 0.0
  %109 = vmatpush1.msra.mxu0 0.0
  %110 = vmatprep.subr.mxu0 0.0
  %111 = vmatpush1.msra.mxu0 0.0
  %112 = vmatprep.subr.mxu0 0.0
  %113 = vmatpush1.msra.mxu0 0.0
  %114 = vmatprep.subr.mxu0 0.0
  %115 = vmatpush1.msra.mxu0 0.0
  %116 = vmatprep.subr.mxu0 0.0
  %117 = vmatpush1.msra.mxu0 %v31
  %118 = vmatprep.subr.mxu0 0.0
  %119 = vmatpush1.msra.mxu0 %v30
  %120 = vmatprep.subr.mxu0 0.0
  %121 = vmatpush2.msra.mxu0 0.0
  %122 = vmatprep.subr.mxu0 0.0
  %123 = vmatpush2.msra.mxu0 0.0
  %124 = vmatprep.subr.mxu0 0.0
  %125 = vmatpush2.msra.mxu0 0.0
  %126 = vmatprep.subr.mxu0 0.0
  %127 = vmatpush2.msra.mxu0 0.0
  %128 = vmatprep.subr.mxu0 0.0
  %129 = vmatpush2.msra.mxu0 0.0
  %130 = vmatprep.subr.mxu0 0.0
  %131 = vmatpush2.msra.mxu0 0.0
  %132 = vmatprep.subr.mxu0 0.0
  %133 = vmatpush2.msra.mxu0 0.0
  %134 = vmatprep.subr.mxu0 0.0
  %135 = vmatpush2.msra.mxu0 0.0
  %136 = vmatprep.subr.mxu0 0.0
  %137 = vmatpush2.msra.mxu0 0.0
  %138 = vmatprep.subr.mxu0 0.0
  %139 = vmatpush2.msra.mxu0 0.0
  %140 = vmatprep.subr.mxu0 0.0
  %141 = vmatpush2.msra.mxu0 0.0
  %142 = vmatprep.subr.mxu0 0.0
  %143 = vmatpush2.msra.mxu0 0.0
  %144 = vmatprep.subr.mxu0 0.0
  %145 = vmatpush2.msra.mxu0 0.0
  %146 = vmatprep.subr.mxu0 0.0
  %147 = vmatpush2.msra.mxu0 0.0
  %148 = vmatprep.subr.mxu0 0.0
  %149 = vmatpush2.msra.mxu0 0.0
  %150 = vmatprep.subr.mxu0 0.0
  %151 = vmatpush2.msra.mxu0 0.0
  %152 = vmatprep.mubr.f32.mxu0 0.0
  %153 = vmatmul.mubr.f32.gmra.mxu0 %v41
  %v154 = vpop.f32.mrf.mxu0
  %v155 = vadd.f32 %v37, %v154
  %v156 = vpop.f32.mrf.mxu0
  %157 = vmatprep.mubr.f32.mxu0 0.0
  %158 = vmatmul.mubr.f32.gmra.mxu0 %v44
  %v159 = vpop.f32.mrf.mxu0
  %v160 = vadd.f32 %v37, %v159
  %v161 = vpop.f32.mrf.mxu0
  %162 = vmatprep.mubr.f32.mxu0 0.0
  %163 = vmatmul.mubr.f32.gmra.mxu0 %v47
  %v164 = vpop.f32.mrf.mxu0
  %v165 = vadd.f32 %v37, %v164
  %v166 = vpop.f32.mrf.mxu0
  %167 = vmatprep.mubr.f32.mxu0 0.0
  %168 = vmatmul.mubr.f32.gmra.mxu0 %v50
  %v169 = vpop.f32.mrf.mxu0
  %v170 = vadd.f32 %v37, %v169
  %v171 = vpop.f32.mrf.mxu0
  %172 = vmatprep.mubr.f32.mxu0 0.0
  %173 = vmatmul.mubr.f32.gmra.mxu0 %v53
  %v174 = vpop.f32.mrf.mxu0
  %v175 = vadd.f32 %v37, %v174
  %v176 = vpop.f32.mrf.mxu0
  %177 = vmatprep.mubr.f32.mxu0 0.0
  %178 = vmatmul.mubr.f32.gmra.mxu0 %v56
  %v179 = vpop.f32.mrf.mxu0
  %v180 = vadd.f32 %v37, %v179
  %v181 = vpop.f32.mrf.mxu0
  %182 = vmatprep.mubr.f32.mxu0 0.0
  %183 = vmatmul.mubr.f32.gmra.mxu0 %v59
  %v184 = vpop.f32.mrf.mxu0
  %v185 = vadd.f32 %v37, %v184
  %v186 = vpop.f32.mrf.mxu0
  %187 = vmatprep.mubr.f32.mxu0 0.0
  %188 = vmatmul.mubr.f32.gmra.mxu0 %v62
  %v189 = vpop.f32.mrf.mxu0
  %v190 = vadd.f32 %v37, %v189
  %v191 = vpop.f32.mrf.mxu0
  %192 = vmatprep.mubr.f32.mxu0 0.0
  %193 = vmatmul.mubr.f32.gmra.mxu0 %v65
  %v194 = vpop.f32.mrf.mxu0
  %v195 = vadd.f32 %v37, %v194
  %v196 = vpop.f32.mrf.mxu0
  %197 = vmatprep.mubr.f32.mxu0 0.0
  %198 = vmatmul.mubr.f32.gmra.mxu0 %v68
  %v199 = vpop.f32.mrf.mxu0
  %v200 = vadd.f32 %v37, %v199
  %v201 = vpop.f32.mrf.mxu0
  %202 = vmatprep.mubr.f32.mxu0 0.0
  %203 = vmatmul.mubr.f32.gmra.mxu0 %v71
  %v204 = vpop.f32.mrf.mxu0
  %v205 = vadd.f32 %v37, %v204
  %v206 = vpop.f32.mrf.mxu0
  %207 = vmatprep.mubr.f32.mxu0 0.0
  %208 = vmatmul.mubr.f32.gmra.mxu0 %v74
  %v209 = vpop.f32.mrf.mxu0
  %v210 = vadd.f32 %v37, %v209
  %v211 = vpop.f32.mrf.mxu0
  %212 = vmatprep.mubr.f32.mxu0 0.0
  %213 = vmatmul.mubr.f32.gmra.mxu0 %v77
  %v214 = vpop.f32.mrf.mxu0
  %v215 = vadd.f32 %v37, %v214
  %v216 = vpop.f32.mrf.mxu0
  %217 = vmatprep.mubr.f32.mxu0 0.0
  %218 = vmatmul.mubr.f32.gmra.mxu0 %v80
  %v219 = vpop.f32.mrf.mxu0
  %v220 = vadd.f32 %v37, %v219
  %v221 = vpop.f32.mrf.mxu0
  %222 = vmatprep.mubr.f32.mxu0 0.0
  %223 = vmatmul.mubr.f32.gmra.mxu0 %v83
  %v224 = vpop.f32.mrf.mxu0
  %v225 = vadd.f32 %v37, %v224
  %v226 = vpop.f32.mrf.mxu0
  %227 = vmatprep.mubr.f32.mxu0 0.0
  %228 = vmatmul.mubr.f32.gmra.mxu0 %v86
  %v229 = vpop.f32.mrf.mxu0
  %v230 = vadd.f32 %v37, %v229
  %v231 = vpop.f32.mrf.mxu0
  %232 = vdwg.mxu0
  %v233 = vmax.f32 %v155, 0.0
  %v234 = vmax.f32 %v160, 0.0
  %v235 = vmax.f32 %v165, 0.0
  %v236 = vmax.f32 %v170, 0.0
  %v237 = vmax.f32 %v175, 0.0
  %v238 = vmax.f32 %v180, 0.0
  %v239 = vmax.f32 %v185, 0.0
  %v240 = vmax.f32 %v190, 0.0
  %v241 = vmax.f32 %v195, 0.0
  %v242 = vmax.f32 %v200, 0.0
  %v243 = vmax.f32 %v205, 0.0
  %v244 = vmax.f32 %v210, 0.0
  %v245 = vmax.f32 %v215, 0.0
  %v246 = vmax.f32 %v220, 0.0
  %v247 = vmax.f32 %v225, 0.0
  %v248 = vmax.f32 %v230, 0.0
  %vm249 = vcmask 64512
  %250 = vst.msk [vmem:[%s3] sm:$0xff] %vm249, %v233
  %251 = vst.msk [vmem:[%s3 + $0x8] sm:$0xff] %vm249, %v234
  %252 = vst.msk [vmem:[%s3 + $0x10] sm:$0xff] %vm249, %v235
  %253 = vst.msk [vmem:[%s3 + $0x18] sm:$0xff] %vm249, %v236
  %254 = vst.msk [vmem:[%s3 + $0x20] sm:$0xff] %vm249, %v237
  %255 = vst.msk [vmem:[%s3 + $0x28] sm:$0xff] %vm249, %v238
  %256 = vst.msk [vmem:[%s3 + $0x30] sm:$0xff] %vm249, %v239
  %257 = vst.msk [vmem:[%s3 + $0x38] sm:$0xff] %vm249, %v240
  %258 = vst.msk [vmem:[%s3 + $0x40] sm:$0xff] %vm249, %v241
  %259 = vst.msk [vmem:[%s3 + $0x48] sm:$0xff] %vm249, %v242
  %260 = vst.msk [vmem:[%s3 + $0x50] sm:$0xff] %vm249, %v243
  %261 = vst.msk [vmem:[%s3 + $0x58] sm:$0xff] %vm249, %v244
  %262 = vst.msk [vmem:[%s3 + $0x60] sm:$0xff] %vm249, %v245
  %263 = vst.msk [vmem:[%s3 + $0x68] sm:$0xff] %vm249, %v246
  %264 = vst.msk [vmem:[%s3 + $0x70] sm:$0xff] %vm249, %v247
  %265 = vst.msk [vmem:[%s3 + $0x78] sm:$0xff] %vm249, %v248
  // Predicated region
  $region14: #{tpu_custom_call.1} parent=0 // pred_check
    _
  $region15: #{tpu_custom_call.1} parent=0 // pred_check_branch
    %267 = sbr.rel (0) target = $region17
  $region16: #{tpu_custom_call.1} parent=0 // pred_region
    _
  $region17: #{tpu_custom_call.1} parent=0 // pred_fallthru
    _
  // Predicated region
  $region18: #{tpu_custom_call.1} parent=0 // pred_check
    _
  $region19: #{tpu_custom_call.1} parent=0 // pred_check_branch
    %269 = sbr.rel (0) target = $region21
  $region20: #{tpu_custom_call.1} parent=0 // pred_region
    _
  $region21: #{tpu_custom_call.1} parent=0 // pred_fallthru
    _

</llo_original>
